<compile_context>
chip_gen: v7x
topology: tpu7x:2x2x1
jax: 0.10.0
libtpu: 0.0.40
codegen_flags: <defaults>
</compile_context>

<pallas_src>
import functools

import jax
import jax.numpy as jnp
from jax.experimental import pallas as pl
from jax.experimental.pallas import tpu as pltpu

_HID = 128      # lane-padded hidden width (real hidden sizes: 100, 100, 10)
_EPS = 1e-5     # BatchNorm1d default eps


def critic_kernel(x_ref, mask_ref, le_ref, small_ref, mats_ref, y_ref,
                  h1_acc, sx_acc, *, n_total, tile_n, inv_b):
    k = pl.program_id(0)

    @pl.when(k == 0)
    def _init():
        h1_acc[...] = jnp.zeros_like(h1_acc)
        sx_acc[...] = jnp.zeros_like(sx_acc)

    # ---- streamed reduction over the item axis (the HBM-bound part) --------
    x = x_ref[...].astype(jnp.float32)          # cast in-kernel, not in wrapper
    m = mask_ref[...]
    if m.dtype == jnp.bool_:                    # static (trace-time) dispatch
        xm = jnp.where(m, x, jnp.zeros_like(x))
    else:
        xm = x * m.astype(jnp.float32)

    if n_total % tile_n != 0:                   # mask the ragged tail tile
        lane = jax.lax.broadcasted_iota(jnp.int32, x.shape, 1)
        valid = (k * tile_n + lane) < n_total
        x = jnp.where(valid, x, 0.0)
        xm = jnp.where(valid, xm, 0.0)

    h1_acc[...] += jnp.sum(xm, axis=1, keepdims=True)   # H1 partial
    sx_acc[...] += jnp.sum(x, axis=1, keepdims=True)    # sum(x) partial

    # ---- epilogue: BatchNorm + MLP on the resident [B,*] features ----------
    @pl.when(k == pl.num_programs(0) - 1)
    def _epilogue():
        h1 = h1_acc[...]                        # [B,1]  sum(x*mask)
        h0 = sx_acc[...] - h1                   # [B,1]  sum(x*(1-mask)) (algebraic)
        le = le_ref[...]                        # [B,1]

        # One-pass batch stats (training-mode, biased variance). gamma/beta
        # are folded into W1/b1 at pack time, so only standardization here.
        def standardize(col):
            s = jnp.sum(col, axis=0, keepdims=True)
            ss = jnp.sum(col * col, axis=0, keepdims=True)
            mean = s * inv_b
            var = jnp.maximum(ss * inv_b - mean * mean, 0.0)
            return (col - mean) * jax.lax.rsqrt(var + _EPS)

        s_le = standardize(le)
        s_h0 = standardize(h0)
        s_h1 = standardize(h1)

        w1_le = small_ref[0:1, :]     # [1,128] gamma-scaled W1 row for LE
        w1_h0 = small_ref[1:2, :]     # [1,128] gamma-scaled W1 row for H0
        w1_h1 = small_ref[2:3, :]     # [1,128] gamma-scaled W1 row for H1
        b1 = small_ref[3:4, :]        # [1,128] b1 + beta @ W1
        b2 = small_ref[4:5, :]        # [1,128]
        b3 = small_ref[5:6, :]        # [1,128] (10 valid lanes)
        w4 = small_ref[6:7, :]        # [1,128] (10 valid lanes)
        b4 = small_ref[7:8, 0:1]      # [1,1]

        # Layer 1 (Linear(3,100)+ReLU) as VPU broadcast-FMA (K=3 would waste MXU).
        z1 = jnp.maximum(s_le * w1_le + s_h0 * w1_h0 + s_h1 * w1_h1 + b1, 0.0)
        # Layers 2/3: lane-dense MXU matmuls on zero-padded weights.
        w2 = mats_ref[0]
        z2 = jnp.maximum(
            jnp.dot(z1.astype(w2.dtype), w2,
                    preferred_element_type=jnp.float32) + b2, 0.0)
        w3 = mats_ref[1]
        z3 = jnp.maximum(
            jnp.dot(z2.astype(w3.dtype), w3,
                    preferred_element_type=jnp.float32) + b3, 0.0)
        # Output layer Linear(10,1)+Sigmoid as VPU mul + lane reduce + EUP.
        y_ = jnp.sum(z3 * w4, axis=1, keepdims=True) + b4
        y_ref[...] = jax.nn.sigmoid(y_)


def _linear_params(key, fan_in, fan_out):
    # PyTorch-style uniform(-1/sqrt(fan_in), 1/sqrt(fan_in)) init, deterministic.
    kw, kb = jax.random.split(key)
    bound = 1.0 / jnp.sqrt(float(fan_in))
    w = jax.random.uniform(kw, (fan_in, fan_out), jnp.float32, -bound, bound)
    b = jax.random.uniform(kb, (1, fan_out), jnp.float32, -bound, bound)
    return w, b


def init_critic_params(key, ci=3):
    k1, k2, k3, k4 = jax.random.split(key, 4)
    gamma = jnp.ones((1, ci), jnp.float32)     # BatchNorm weight init
    beta = jnp.zeros((1, ci), jnp.float32)     # BatchNorm bias init
    w1, b1 = _linear_params(k1, ci, 100)
    w2, b2 = _linear_params(k2, 100, 100)
    w3, b3 = _linear_params(k3, 100, 10)
    w4, b4 = _linear_params(k4, 10, 1)
    return dict(gamma=gamma, beta=beta, w1=w1, b1=b1, w2=w2, b2=b2,
                w3=w3, b3=b3, w4=w4, b4=b4)


def pack_critic_params(params, *, matmul_dtype=jnp.float32):
    """Coalesce all params into 2 resident arrays (done once, host-side).

    BatchNorm's affine (gamma, beta) is folded into the first Linear:
      xn = gamma*s + beta  =>  xn @ W1 + b1 = s @ (gamma⊙W1) + (beta @ W1 + b1)
    matmul_dtype=jnp.bfloat16 gives ~3x MXU throughput for large B (slightly
    different numerics than the f32 reference).
    """
    f32 = jnp.float32
    g = params["gamma"].reshape(-1).astype(f32)        # [3]
    bt = params["beta"].reshape(-1).astype(f32)        # [3]
    w1 = params["w1"].astype(f32)                      # [3, 100]
    w1_eff = w1 * g[:, None]                           # gamma-scaled rows
    b1_eff = params["b1"].astype(f32) + (bt @ w1)[None, :]

    small = jnp.zeros((8, _HID), f32)
    small = small.at[0:3, :100].set(w1_eff)            # W1 rows (LE, H0, H1)
    small = small.at[3, :100].set(b1_eff[0])           # b1 (beta-folded)
    small = small.at[4, :100].set(params["b2"].reshape(-1))
    small = small.at[5, :10].set(params["b3"].reshape(-1))
    small = small.at[6, :10].set(params["w4"].reshape(-1))
    small = small.at[7, 0].set(params["b4"][0, 0])

    # [2, 128, 128]: zero-padded W2, W3 (padding is exact: extra rows/cols 0).
    w2p = jnp.zeros((_HID, _HID), f32).at[:100, :100].set(params["w2"])
    w3p = jnp.zeros((_HID, _HID), f32).at[:100, :10].set(params["w3"])
    mats = jnp.stack([w2p, w3p], axis=0).astype(matmul_dtype)
    return small, mats


def _choose_tile_n(B, N, budget_bytes):
    """Item-axis tile: whole N if small, else a multiple of 128 sized so an f32
    x block stays ~under `budget_bytes` (keeps 2 inputs x 2 pipeline buffers
    comfortably inside v7x's 64 MiB VMEM)."""
    if N <= 128 or B * N * 4 <= budget_bytes:
        return N
    return max(128, min(2048, (budget_bytes // (B * 4)) // 128 * 128))


def critic_forward(x, le, mask, packed, *, tile_n=None,
                   block_budget_bytes=4 * 1024 * 1024):
    small, mats = packed
    B, N = x.shape
    le2 = le.reshape(B, 1).astype(jnp.float32)

    tn = tile_n if tile_n is not None else _choose_tile_n(B, N, block_budget_bytes)
    kt = pl.cdiv(N, tn)

    kernel = functools.partial(critic_kernel, n_total=N, tile_n=tn, inv_b=1.0 / B)

    return pl.pallas_call(
        kernel,
        out_shape=jax.ShapeDtypeStruct((B, 1), jnp.float32),
        grid=(kt,),
        in_specs=[
            pl.BlockSpec((B, tn), lambda k: (0, k)),            # x: streamed over N
            pl.BlockSpec((B, tn), lambda k: (0, k)),            # mask: streamed over N
            pl.BlockSpec((B, 1), lambda k: (0, 0)),             # LE: resident
            pl.BlockSpec((8, _HID), lambda k: (0, 0)),          # small params: resident
            pl.BlockSpec((2, _HID, _HID), lambda k: (0, 0, 0)),  # W2/W3: resident
        ],
        out_specs=pl.BlockSpec((B, 1), lambda k: (0, 0)),
        scratch_shapes=[
            pltpu.VMEM((B, 1), jnp.float32),   # running sum(x*mask)  -> H1
            pltpu.VMEM((B, 1), jnp.float32),   # running sum(x)       -> H0 = sum - H1
        ],
        compiler_params=pltpu.CompilerParams(
            dimension_semantics=("arbitrary",),
            vmem_limit_bytes=32 * 1024 * 1024,
        ),
    )(x, mask, le2, small, mats)


def critic_reference(x, le, mask, params):
    """Pure-JAX reference of the PyTorch module (train-mode BatchNorm)."""
    xf = x.astype(jnp.float32)
    mf = mask.astype(jnp.float32)
    h1 = jnp.sum(xf * mf, axis=1)
    h0 = jnp.sum(xf * (1.0 - mf), axis=1)
    h = jnp.stack([le.astype(jnp.float32), h0, h1], axis=1)     # [B,3]
    mean = jnp.mean(h, axis=0, keepdims=True)
    var = jnp.mean((h - mean) ** 2, axis=0, keepdims=True)
    xn = (h - mean) / jnp.sqrt(var + _EPS) * params["gamma"] + params["beta"]
    z1 = jnp.maximum(xn @ params["w1"] + params["b1"], 0.0)
    z2 = jnp.maximum(z1 @ params["w2"] + params["b2"], 0.0)
    z3 = jnp.maximum(z2 @ params["w3"] + params["b3"], 0.0)
    return jax.nn.sigmoid(z3 @ params["w4"] + params["b4"])


if __name__ == "__main__":
    key = jax.random.PRNGKey(0)
    kx, km, kl, kp, kx2, km2, kl2 = jax.random.split(key, 7)

    params = init_critic_params(kp, ci=3)
    packed = pack_critic_params(params)

    # Small demo: single-tile path (B users, N items). mask is 1 byte/elem.
    B, N = 8, 16
    x = jax.random.uniform(kx, (B, N), jnp.float32)
    mask = (jax.random.uniform(km, (B, N)) > 0.5).astype(jnp.int8)
    LE = jax.random.uniform(kl, (B,), jnp.float32)

    y = critic_forward(x, LE, mask, packed)
    jax.block_until_ready(y)
    assert y.shape == (B, 1)
    y_ref = critic_reference(x, LE, mask, params)
    assert float(jnp.max(jnp.abs(y - y_ref))) < 5e-3

    # Larger N: exercises the pipelined N-grid + accumulators + ragged tail.
    B2, N2 = 16, 300
    x2 = jax.random.uniform(kx2, (B2, N2), jnp.float32)
    mask2 = (jax.random.uniform(km2, (B2, N2)) > 0.5).astype(jnp.int8)
    LE2 = jax.random.uniform(kl2, (B2,), jnp.float32)

    y2 = critic_forward(x2, LE2, mask2, packed, tile_n=128)   # grid of 3 tiles
    jax.block_until_ready(y2)
    assert y2.shape == (B2, 1)
    y2_ref = critic_reference(x2, LE2, mask2, params)
    assert float(jnp.max(jnp.abs(y2 - y2_ref))) < 5e-3

    print("KERNEL_OK")
</pallas_src>

<mosaic_0001>
module attributes {stable_mosaic.version = 11 : i64} {
  func.func @critic_kernel(%arg0: i32, %arg1: memref<8x16xf32, #tpu.memory_space<vmem>>, %arg2: memref<8x16xi8, #tpu.memory_space<vmem>>, %arg3: memref<8x1xf32, #tpu.memory_space<vmem>>, %arg4: memref<8x128xf32, #tpu.memory_space<vmem>>, %arg5: memref<2x128x128xf32, #tpu.memory_space<vmem>>, %arg6: memref<8x1xf32, #tpu.memory_space<vmem>>, %arg7: memref<8x1xf32, #tpu.memory_space<vmem>>, %arg8: memref<8x1xf32, #tpu.memory_space<vmem>>) attributes {dimension_semantics = [#tpu.dimension_semantics<arbitrary>], iteration_bounds = array<i64: 1>, scalar_prefetch = 0 : i64, scratch_operands = 2 : i64, tpu.core_type = #tpu.core_type<tc>, window_params = [{transform_indices = @transform_0, window_bounds = array<i64: 8, 16>}, {transform_indices = @transform_1, window_bounds = array<i64: 8, 16>}, {pipeline_mode = #tpu.pipeline_mode<synchronous>, transform_indices = @transform_2, window_bounds = array<i64: 8, 1>}, {pipeline_mode = #tpu.pipeline_mode<synchronous>, transform_indices = @transform_3, window_bounds = array<i64: 8, 128>}, {pipeline_mode = #tpu.pipeline_mode<synchronous>, transform_indices = @transform_4, window_bounds = array<i64: 2, 128, 128>}, {pipeline_mode = #tpu.pipeline_mode<synchronous>, transform_indices = @transform_5, window_bounds = array<i64: 8, 1>}]} {
    %c0_i32 = arith.constant 0 : i32
    %0 = arith.cmpi eq, %arg0, %c0_i32 : i32
    %1 = arith.extui %0 : i1 to i32
    %c0_i32_0 = arith.constant 0 : i32
    %2 = arith.cmpi ne, %1, %c0_i32_0 : i32
    scf.if %2 {
      %cst_15 = arith.constant 0.000000e+00 : f32
      %20 = vector.broadcast %cst_15 : f32 to vector<8x1xf32>
      %c0_16 = arith.constant 0 : index
      %c0_17 = arith.constant 0 : index
      %21 = vector.load %arg7[%c0_16, %c0_17] : memref<8x1xf32, #tpu.memory_space<vmem>>, vector<8x1xf32>
      tpu.vector_store %arg7[%c0_16, %c0_17], %20 {strides = array<i32>} : memref<8x1xf32, #tpu.memory_space<vmem>>, vector<8x1xf32>,
      %cst_18 = arith.constant 0.000000e+00 : f32
      %22 = vector.broadcast %cst_18 : f32 to vector<8x1xf32>
      %c0_19 = arith.constant 0 : index
      %c0_20 = arith.constant 0 : index
      %23 = vector.load %arg8[%c0_19, %c0_20] : memref<8x1xf32, #tpu.memory_space<vmem>>, vector<8x1xf32>
      tpu.vector_store %arg8[%c0_19, %c0_20], %22 {strides = array<i32>} : memref<8x1xf32, #tpu.memory_space<vmem>>, vector<8x1xf32>,
    } else {
    }
    %c0 = arith.constant 0 : index
    %c0_1 = arith.constant 0 : index
    %3 = vector.load %arg1[%c0, %c0_1] : memref<8x16xf32, #tpu.memory_space<vmem>>, vector<8x16xf32>
    %c0_2 = arith.constant 0 : index
    %c0_3 = arith.constant 0 : index
    %4 = vector.load %arg2[%c0_2, %c0_3] : memref<8x16xi8, #tpu.memory_space<vmem>>, vector<8x16xi8>
    %5 = arith.sitofp %4 : vector<8x16xi8> to vector<8x16xf32>
    %6 = arith.mulf %3, %5 : vector<8x16xf32>
    %c0_4 = arith.constant 0 : index
    %c0_5 = arith.constant 0 : index
    %7 = vector.load %arg7[%c0_4, %c0_5] : memref<8x1xf32, #tpu.memory_space<vmem>>, vector<8x1xf32>
    %cst = arith.constant dense<0.000000e+00> : vector<8xf32>
    %8 = vector.multi_reduction <add>, %6, %cst [1] : vector<8x16xf32> to vector<8xf32>
    %9 = vector.shape_cast %8 : vector<8xf32> to vector<8x1xf32>
    %10 = arith.addf %7, %9 : vector<8x1xf32>
    %c0_6 = arith.constant 0 : index
    %c0_7 = arith.constant 0 : index
    %11 = vector.load %arg7[%c0_6, %c0_7] : memref<8x1xf32, #tpu.memory_space<vmem>>, vector<8x1xf32>
    tpu.vector_store %arg7[%c0_6, %c0_7], %10 {strides = array<i32>} : memref<8x1xf32, #tpu.memory_space<vmem>>, vector<8x1xf32>,
    %c0_8 = arith.constant 0 : index
    %c0_9 = arith.constant 0 : index
    %12 = vector.load %arg8[%c0_8, %c0_9] : memref<8x1xf32, #tpu.memory_space<vmem>>, vector<8x1xf32>
    %cst_10 = arith.constant dense<0.000000e+00> : vector<8xf32>
    %13 = vector.multi_reduction <add>, %3, %cst_10 [1] : vector<8x16xf32> to vector<8xf32>
    %14 = vector.shape_cast %13 : vector<8xf32> to vector<8x1xf32>
    %15 = arith.addf %12, %14 : vector<8x1xf32>
    %c0_11 = arith.constant 0 : index
    %c0_12 = arith.constant 0 : index
    %16 = vector.load %arg8[%c0_11, %c0_12] : memref<8x1xf32, #tpu.memory_space<vmem>>, vector<8x1xf32>
    tpu.vector_store %arg8[%c0_11, %c0_12], %15 {strides = array<i32>} : memref<8x1xf32, #tpu.memory_space<vmem>>, vector<8x1xf32>,
    %c0_i32_13 = arith.constant 0 : i32
    %17 = arith.cmpi eq, %arg0, %c0_i32_13 : i32
    %18 = arith.extui %17 : i1 to i32
    %c0_i32_14 = arith.constant 0 : i32
    %19 = arith.cmpi ne, %18, %c0_i32_14 : i32
    scf.if %19 {
      %c0_15 = arith.constant 0 : index
      %c0_16 = arith.constant 0 : index
      %20 = vector.load %arg7[%c0_15, %c0_16] : memref<8x1xf32, #tpu.memory_space<vmem>>, vector<8x1xf32>
      %c0_17 = arith.constant 0 : index
      %c0_18 = arith.constant 0 : index
      %21 = vector.load %arg8[%c0_17, %c0_18] : memref<8x1xf32, #tpu.memory_space<vmem>>, vector<8x1xf32>
      %22 = arith.subf %21, %20 : vector<8x1xf32>
      %c0_19 = arith.constant 0 : index
      %c0_20 = arith.constant 0 : index
      %23 = vector.load %arg3[%c0_19, %c0_20] : memref<8x1xf32, #tpu.memory_space<vmem>>, vector<8x1xf32>
      %cst_21 = arith.constant dense<0.000000e+00> : vector<1xf32>
      %24 = vector.multi_reduction <add>, %23, %cst_21 [0] : vector<8x1xf32> to vector<1xf32>
      %25 = vector.shape_cast %24 : vector<1xf32> to vector<1x1xf32>
      %26 = arith.mulf %23, %23 : vector<8x1xf32>
      %cst_22 = arith.constant dense<0.000000e+00> : vector<1xf32>
      %27 = vector.multi_reduction <add>, %26, %cst_22 [0] : vector<8x1xf32> to vector<1xf32>
      %28 = vector.shape_cast %27 : vector<1xf32> to vector<1x1xf32>
      %cst_23 = arith.constant 1.250000e-01 : f32
      %29 = vector.broadcast %cst_23 : f32 to vector<1x1xf32>
      %30 = arith.mulf %25, %29 : vector<1x1xf32>
      %cst_24 = arith.constant 1.250000e-01 : f32
      %31 = vector.broadcast %cst_24 : f32 to vector<1x1xf32>
      %32 = arith.mulf %28, %31 : vector<1x1xf32>
      %33 = arith.mulf %30, %30 : vector<1x1xf32>
      %34 = arith.subf %32, %33 : vector<1x1xf32>
      %cst_25 = arith.constant 0.000000e+00 : f32
      %35 = vector.broadcast %cst_25 : f32 to vector<1x1xf32>
      %36 = arith.maximumf %34, %35 : vector<1x1xf32>
      %37 = vector.broadcast %30 : vector<1x1xf32> to vector<8x1xf32>
      %38 = arith.subf %23, %37 : vector<8x1xf32>
      %cst_26 = arith.constant 9.99999974E-6 : f32
      %39 = vector.broadcast %cst_26 : f32 to vector<1x1xf32>
      %40 = arith.addf %36, %39 : vector<1x1xf32>
      %41 = math.rsqrt %40 : vector<1x1xf32>
      %42 = vector.broadcast %41 : vector<1x1xf32> to vector<8x1xf32>
      %43 = arith.mulf %38, %42 : vector<8x1xf32>
      %cst_27 = arith.constant dense<0.000000e+00> : vector<1xf32>
      %44 = vector.multi_reduction <add>, %22, %cst_27 [0] : vector<8x1xf32> to vector<1xf32>
      %45 = vector.shape_cast %44 : vector<1xf32> to vector<1x1xf32>
      %46 = arith.mulf %22, %22 : vector<8x1xf32>
      %cst_28 = arith.constant dense<0.000000e+00> : vector<1xf32>
      %47 = vector.multi_reduction <add>, %46, %cst_28 [0] : vector<8x1xf32> to vector<1xf32>
      %48 = vector.shape_cast %47 : vector<1xf32> to vector<1x1xf32>
      %cst_29 = arith.constant 1.250000e-01 : f32
      %49 = vector.broadcast %cst_29 : f32 to vector<1x1xf32>
      %50 = arith.mulf %45, %49 : vector<1x1xf32>
      %cst_30 = arith.constant 1.250000e-01 : f32
      %51 = vector.broadcast %cst_30 : f32 to vector<1x1xf32>
      %52 = arith.mulf %48, %51 : vector<1x1xf32>
      %53 = arith.mulf %50, %50 : vector<1x1xf32>
      %54 = arith.subf %52, %53 : vector<1x1xf32>
      %cst_31 = arith.constant 0.000000e+00 : f32
      %55 = vector.broadcast %cst_31 : f32 to vector<1x1xf32>
      %56 = arith.maximumf %54, %55 : vector<1x1xf32>
      %57 = vector.broadcast %50 : vector<1x1xf32> to vector<8x1xf32>
      %58 = arith.subf %22, %57 : vector<8x1xf32>
      %cst_32 = arith.constant 9.99999974E-6 : f32
      %59 = vector.broadcast %cst_32 : f32 to vector<1x1xf32>
      %60 = arith.addf %56, %59 : vector<1x1xf32>
      %61 = math.rsqrt %60 : vector<1x1xf32>
      %62 = vector.broadcast %61 : vector<1x1xf32> to vector<8x1xf32>
      %63 = arith.mulf %58, %62 : vector<8x1xf32>
      %cst_33 = arith.constant dense<0.000000e+00> : vector<1xf32>
      %64 = vector.multi_reduction <add>, %20, %cst_33 [0] : vector<8x1xf32> to vector<1xf32>
      %65 = vector.shape_cast %64 : vector<1xf32> to vector<1x1xf32>
      %66 = arith.mulf %20, %20 : vector<8x1xf32>
      %cst_34 = arith.constant dense<0.000000e+00> : vector<1xf32>
      %67 = vector.multi_reduction <add>, %66, %cst_34 [0] : vector<8x1xf32> to vector<1xf32>
      %68 = vector.shape_cast %67 : vector<1xf32> to vector<1x1xf32>
      %cst_35 = arith.constant 1.250000e-01 : f32
      %69 = vector.broadcast %cst_35 : f32 to vector<1x1xf32>
      %70 = arith.mulf %65, %69 : vector<1x1xf32>
      %cst_36 = arith.constant 1.250000e-01 : f32
      %71 = vector.broadcast %cst_36 : f32 to vector<1x1xf32>
      %72 = arith.mulf %68, %71 : vector<1x1xf32>
      %73 = arith.mulf %70, %70 : vector<1x1xf32>
      %74 = arith.subf %72, %73 : vector<1x1xf32>
      %cst_37 = arith.constant 0.000000e+00 : f32
      %75 = vector.broadcast %cst_37 : f32 to vector<1x1xf32>
      %76 = arith.maximumf %74, %75 : vector<1x1xf32>
      %77 = vector.broadcast %70 : vector<1x1xf32> to vector<8x1xf32>
      %78 = arith.subf %20, %77 : vector<8x1xf32>
      %cst_38 = arith.constant 9.99999974E-6 : f32
      %79 = vector.broadcast %cst_38 : f32 to vector<1x1xf32>
      %80 = arith.addf %76, %79 : vector<1x1xf32>
      %81 = math.rsqrt %80 : vector<1x1xf32>
      %82 = vector.broadcast %81 : vector<1x1xf32> to vector<8x1xf32>
      %83 = arith.mulf %78, %82 : vector<8x1xf32>
      %c0_39 = arith.constant 0 : index
      %c0_40 = arith.constant 0 : index
      %84 = vector.load %arg4[%c0_39, %c0_40] : memref<8x128xf32, #tpu.memory_space<vmem>>, vector<1x128xf32>
      %c1 = arith.constant 1 : index
      %c0_41 = arith.constant 0 : index
      %85 = vector.load %arg4[%c1, %c0_41] : memref<8x128xf32, #tpu.memory_space<vmem>>, vector<1x128xf32>
      %c2 = arith.constant 2 : index
      %c0_42 = arith.constant 0 : index
      %86 = vector.load %arg4[%c2, %c0_42] : memref<8x128xf32, #tpu.memory_space<vmem>>, vector<1x128xf32>
      %c3 = arith.constant 3 : index
      %c0_43 = arith.constant 0 : index
      %87 = vector.load %arg4[%c3, %c0_43] : memref<8x128xf32, #tpu.memory_space<vmem>>, vector<1x128xf32>
      %c4 = arith.constant 4 : index
      %c0_44 = arith.constant 0 : index
      %88 = vector.load %arg4[%c4, %c0_44] : memref<8x128xf32, #tpu.memory_space<vmem>>, vector<1x128xf32>
      %c5 = arith.constant 5 : index
      %c0_45 = arith.constant 0 : index
      %89 = vector.load %arg4[%c5, %c0_45] : memref<8x128xf32, #tpu.memory_space<vmem>>, vector<1x128xf32>
      %c6 = arith.constant 6 : index
      %c0_46 = arith.constant 0 : index
      %90 = vector.load %arg4[%c6, %c0_46] : memref<8x128xf32, #tpu.memory_space<vmem>>, vector<1x128xf32>
      %c7 = arith.constant 7 : index
      %c0_47 = arith.constant 0 : index
      %91 = vector.load %arg4[%c7, %c0_47] : memref<8x128xf32, #tpu.memory_space<vmem>>, vector<1x1xf32>
      %92 = vector.broadcast %43 : vector<8x1xf32> to vector<8x128xf32>
      %93 = vector.broadcast %84 : vector<1x128xf32> to vector<8x128xf32>
      %94 = arith.mulf %92, %93 : vector<8x128xf32>
      %95 = vector.broadcast %63 : vector<8x1xf32> to vector<8x128xf32>
      %96 = vector.broadcast %85 : vector<1x128xf32> to vector<8x128xf32>
      %97 = arith.mulf %95, %96 : vector<8x128xf32>
      %98 = arith.addf %94, %97 : vector<8x128xf32>
      %99 = vector.broadcast %83 : vector<8x1xf32> to vector<8x128xf32>
      %100 = vector.broadcast %86 : vector<1x128xf32> to vector<8x128xf32>
      %101 = arith.mulf %99, %100 : vector<8x128xf32>
      %102 = arith.addf %98, %101 : vector<8x128xf32>
      %103 = vector.broadcast %87 : vector<1x128xf32> to vector<8x128xf32>
      %104 = arith.addf %102, %103 : vector<8x128xf32>
      %cst_48 = arith.constant 0.000000e+00 : f32
      %105 = vector.broadcast %cst_48 : f32 to vector<8x128xf32>
      %106 = arith.maximumf %104, %105 : vector<8x128xf32>
      %c0_49 = arith.constant 0 : index
      %c0_50 = arith.constant 0 : index
      %c0_51 = arith.constant 0 : index
      %107 = vector.load %arg5[%c0_49, %c0_50, %c0_51] : memref<2x128x128xf32, #tpu.memory_space<vmem>>, vector<1x128x128xf32>
      %108 = vector.shape_cast %107 : vector<1x128x128xf32> to vector<128x128xf32>
      %cst_52 = arith.constant dense<0.000000e+00> : vector<8x128xf32>
      %109 = tpu.matmul %106, %108, %cst_52 {dimension_numbers = #tpu.dot_dimension_numbers<[1], [0], [0], [1], [0, 0, 1, 1], [], []>} : vector<8x128xf32>, vector<128x128xf32>, vector<8x128xf32> -> vector<8x128xf32>
      %110 = vector.broadcast %88 : vector<1x128xf32> to vector<8x128xf32>
      %111 = arith.addf %109, %110 : vector<8x128xf32>
      %cst_53 = arith.constant 0.000000e+00 : f32
      %112 = vector.broadcast %cst_53 : f32 to vector<8x128xf32>
      %113 = arith.maximumf %111, %112 : vector<8x128xf32>
      %c1_54 = arith.constant 1 : index
      %c0_55 = arith.constant 0 : index
      %c0_56 = arith.constant 0 : index
      %114 = vector.load %arg5[%c1_54, %c0_55, %c0_56] : memref<2x128x128xf32, #tpu.memory_space<vmem>>, vector<1x128x128xf32>
      %115 = vector.shape_cast %114 : vector<1x128x128xf32> to vector<128x128xf32>
      %cst_57 = arith.constant dense<0.000000e+00> : vector<8x128xf32>
      %116 = tpu.matmul %113, %115, %cst_57 {dimension_numbers = #tpu.dot_dimension_numbers<[1], [0], [0], [1], [0, 0, 1, 1], [], []>} : vector<8x128xf32>, vector<128x128xf32>, vector<8x128xf32> -> vector<8x128xf32>
      %117 = vector.broadcast %89 : vector<1x128xf32> to vector<8x128xf32>
      %118 = arith.addf %116, %117 : vector<8x128xf32>
      %cst_58 = arith.constant 0.000000e+00 : f32
      %119 = vector.broadcast %cst_58 : f32 to vector<8x128xf32>
      %120 = arith.maximumf %118, %119 : vector<8x128xf32>
      %121 = vector.broadcast %90 : vector<1x128xf32> to vector<8x128xf32>
      %122 = arith.mulf %120, %121 : vector<8x128xf32>
      %cst_59 = arith.constant dense<0.000000e+00> : vector<8xf32>
      %123 = vector.multi_reduction <add>, %122, %cst_59 [1] : vector<8x128xf32> to vector<8xf32>
      %124 = vector.shape_cast %123 : vector<8xf32> to vector<8x1xf32>
      %125 = vector.broadcast %91 : vector<1x1xf32> to vector<8x1xf32>
      %126 = arith.addf %124, %125 : vector<8x1xf32>
      %127 = arith.negf %126 : vector<8x1xf32>
      %128 = math.exp %127 : vector<8x1xf32>
      %cst_60 = arith.constant 1.000000e+00 : f32
      %129 = vector.broadcast %cst_60 : f32 to vector<8x1xf32>
      %130 = arith.addf %129, %128 : vector<8x1xf32>
      %131 = arith.divf %129, %130 : vector<8x1xf32>
      %c0_61 = arith.constant 0 : index
      %c0_62 = arith.constant 0 : index
      %132 = vector.load %arg6[%c0_61, %c0_62] : memref<8x1xf32, #tpu.memory_space<vmem>>, vector<8x1xf32>
      tpu.vector_store %arg6[%c0_61, %c0_62], %131 {strides = array<i32>} : memref<8x1xf32, #tpu.memory_space<vmem>>, vector<8x1xf32>,
    } else {
    }
    return
  }
  func.func @transform_0(%arg0: i32) -> (i32, i32) {
    %c0_i32 = arith.constant 0 : i32
    %c0_i32_0 = arith.constant 0 : i32
    return %c0_i32, %arg0 : i32, i32
  }
  func.func @transform_1(%arg0: i32) -> (i32, i32) {
    %c0_i32 = arith.constant 0 : i32
    %c0_i32_0 = arith.constant 0 : i32
    return %c0_i32, %arg0 : i32, i32
  }
  func.func @transform_2(%arg0: i32) -> (i32, i32) {
    %c0_i32 = arith.constant 0 : i32
    %c0_i32_0 = arith.constant 0 : i32
    %c0_i32_1 = arith.constant 0 : i32
    return %c0_i32, %c0_i32_0 : i32, i32
  }
  func.func @transform_3(%arg0: i32) -> (i32, i32) {
    %c0_i32 = arith.constant 0 : i32
    %c0_i32_0 = arith.constant 0 : i32
    %c0_i32_1 = arith.constant 0 : i32
    return %c0_i32, %c0_i32_0 : i32, i32
  }
  func.func @transform_4(%arg0: i32) -> (i32, i32, i32) {
    %c0_i32 = arith.constant 0 : i32
    %c0_i32_0 = arith.constant 0 : i32
    %c0_i32_1 = arith.constant 0 : i32
    %c0_i32_2 = arith.constant 0 : i32
    return %c0_i32, %c0_i32_0, %c0_i32_1 : i32, i32, i32
  }
  func.func @transform_5(%arg0: i32) -> (i32, i32) {
    %c0_i32 = arith.constant 0 : i32
    %c0_i32_0 = arith.constant 0 : i32
    %c0_i32_1 = arith.constant 0 : i32
    return %c0_i32, %c0_i32_0 : i32, i32
  }
}

</mosaic_0001>

<llo_original>
// kernel: tpu_custom_call.1
$region0: #{tpu_custom_call.1}
  #allocation0 [shape = 'u32[]', space=smem, size = 0x4, offset = 0x4, fixed_abs, tag = 'smem constant byte address 0x4 - core index']
  #allocation1 [shape = 'u32[144,128]{1,0:T(1,128)}', space=vmem, size = 0x12000, scoped, tag = 'internal scratch']
  #allocation2 [shape = 'f32[8,1]{1,0:T(8,128)}', space=vmem, size = 0x1000, scoped, tag = 'scratch operand']
  #allocation3 [shape = 'f32[8,1]{1,0:T(8,128)}', space=vmem, size = 0x1000, scoped, tag = 'scratch operand']
  %s0 = inlined_call_operand.vmem [shape: f32[8,16], index: 0, kind: input, shape index: {}]
  %s1 = inlined_call_operand.hbm [shape: s8[8,16], index: 1, kind: input, shape index: {}]
  %s2 = inlined_call_operand.vmem [shape: f32[8,1], index: 2, kind: input, shape index: {}]
  %s3 = inlined_call_operand.vmem [shape: f32[8,128], index: 3, kind: input, shape index: {}]
  %s4 = inlined_call_operand.hbm [shape: f32[2,128,128], index: 4, kind: input, shape index: {}]
  %s5 = inlined_call_operand.vmem [shape: f32[8,1], index: 5, kind: output, shape index: {}]
  %s6 = sld [smem:[#allocation0]]
  $region46: #{tpu_custom_call.1} parent=0
    _
  %s8 = ssub.s32 1, %s6
  %s9 = scalar_select 0, %s8, %s6
  $region1: #{tpu_custom_call.1} parent=0
    #allocation4 [shape = 'u8[1024]{0}', space=vmem, size = 0x400, scoped, tag = 'input window, operand 1, single buffered']
    #allocation5 [shape = 's32[1]{0}', space=sflag, size = 0x4, scoped, tag = 'scoped memory for tpu_custom_call.1']
    #allocation6 [shape = 'u8[131072]{0}', space=vmem, size = 0x20000, scoped, tag = 'input window, operand 4, single buffered']
    #allocation7 [shape = 's32[1]{0}', space=sflag, size = 0x4, scoped, tag = 'scoped memory for tpu_custom_call.1']
    %10 = vsyncpa [#allocation5], 0
    %11 = vsyncpa [#allocation7], 0
    // Predicated region
    $region2: #{tpu_custom_call.1} parent=1 // pred_check
      _
    $region3: #{tpu_custom_call.1} parent=1 // pred_check_branch
      %13 = sbr.rel (0) target = $region5
    $region4: #{tpu_custom_call.1} parent=1 // pred_region
      _
    $region5: #{tpu_custom_call.1} parent=1 // pred_fallthru
      _
    // Predicated region
    $region6: #{tpu_custom_call.1} parent=1 // pred_check
      _
    $region7: #{tpu_custom_call.1} parent=1 // pred_check_branch
      %15 = sbr.rel (0) target = $region9
    $region8: #{tpu_custom_call.1} parent=1 // pred_region
      %s17 = ssub.s32 32, 32
      %18 = vsyncadd [#allocation5], %s17
      %s20 = sshll.u32 [#allocation4], 4
      %s21 = int_to_ptr.vmem [resolvable:$true] %s20
      %23 = dma.hbm_to_vmem [thread:$0]  %s1, 32, %s21, [#allocation5]
    $region9: #{tpu_custom_call.1} parent=1 // pred_fallthru
      _
    // Predicated region
    $region10: #{tpu_custom_call.1} parent=1 // pred_check
      _
    $region11: #{tpu_custom_call.1} parent=1 // pred_check_branch
      %25 = sbr.rel (0) target = $region13
    $region12: #{tpu_custom_call.1} parent=1 // pred_region
      _
    $region13: #{tpu_custom_call.1} parent=1 // pred_fallthru
      _
    // Predicated region
    $region14: #{tpu_custom_call.1} parent=1 // pred_check
      _
    $region15: #{tpu_custom_call.1} parent=1 // pred_check_branch
      %27 = sbr.rel (0) target = $region17
    $region16: #{tpu_custom_call.1} parent=1 // pred_region
      _
    $region17: #{tpu_custom_call.1} parent=1 // pred_fallthru
      _
    // Predicated region
    $region18: #{tpu_custom_call.1} parent=1 // pred_check
      _
    $region19: #{tpu_custom_call.1} parent=1 // pred_check_branch
      %29 = sbr.rel (0) target = $region21
    $region20: #{tpu_custom_call.1} parent=1 // pred_region
      %s31 = ssub.s32 4096, 4096
      %32 = vsyncadd [#allocation7], %s31
      %s33 = sshll.u32 [#allocation6], 4
      %s34 = int_to_ptr.vmem [resolvable:$true] %s33
      %39 = dma.hbm_to_vmem [thread:$0]  %s4, 4096, %s34, [#allocation7], 128, 128, 8
    $region21: #{tpu_custom_call.1} parent=1 // pred_fallthru
      _
    // Predicated region
    $region22: #{tpu_custom_call.1} parent=1 // pred_check
      _
    $region23: #{tpu_custom_call.1} parent=1 // pred_check_branch
      %41 = sbr.rel (0) target = $region25
    $region24: #{tpu_custom_call.1} parent=1 // pred_region
      %42 = dma.done [#allocation5], 32
    $region25: #{tpu_custom_call.1} parent=1 // pred_fallthru
      _
    // Predicated region
    $region26: #{tpu_custom_call.1} parent=1 // pred_check
      _
    $region27: #{tpu_custom_call.1} parent=1 // pred_check_branch
      %44 = sbr.rel (0) target = $region29
    $region28: #{tpu_custom_call.1} parent=1 // pred_region
      %45 = dma.done [#allocation7], 4096
    $region29: #{tpu_custom_call.1} parent=1 // pred_fallthru
      _
    %p46 = scmp.eq.s32.totalorder 0, 0
    // Predicated region
    $region30: #{tpu_custom_call.1} parent=1 // pred_check
      %p47 = pneg %p46
    $region31: #{tpu_custom_call.1} parent=1 // pred_check_branch
      %49 = sbr.rel (%p47) target = $region33
    $region32: #{tpu_custom_call.1} parent=1 // pred_region
      %vm50 = vcmask 7168
      %51 = vst.msk [vmem:[#allocation2] sm:$0xff] %vm50, 0.0
      %52 = vst.msk [vmem:[#allocation3] sm:$0xff] %vm50, 0.0
    $region33: #{tpu_custom_call.1} parent=1 // pred_fallthru
      _
    %v53 = vld [vmem:[%s0] sm:$0xff]
    %v54 = vld [vmem:[#allocation4] sm:$0x3]
    %v55 = vunpack.c.0.s8 %v54
    %v56 = vcvt.s32.f32 %v55
    %v57 = vmul.f32 %v53, %v56
    %v58 = vld [vmem:[#allocation2] sm:$0xff]
    %vm59 = vcmask 130048
    %v60 = vsel %vm59, %v57, 0.0
    %61 = vadd.xlane.f32.xlu0 %v60
    %v62 = vpop.xlane.xlu0 %61
    %v63 = vadd.f32 %v58, %v62
    %vm64 = vcmask 7168
    %65 = vst.msk [vmem:[#allocation2] sm:$0xff] %vm64, %v63
    %v66 = vld [vmem:[#allocation3] sm:$0xff]
    %v67 = vsel %vm59, %v53, 0.0
    %68 = vadd.xlane.f32.xlu0 %v67
    %v69 = vpop.xlane.xlu0 %68
    %v70 = vadd.f32 %v66, %v69
    %71 = vst.msk [vmem:[#allocation3] sm:$0xff] %vm64, %v70
    // Predicated region
    $region34: #{tpu_custom_call.1} parent=1 // pred_check
      %p72 = pneg %p46
    $region35: #{tpu_custom_call.1} parent=1 // pred_check_branch
      %74 = sbr.rel (%p72) target = $region37
    $region36: #{tpu_custom_call.1} parent=1 // pred_region
      %v75 = vld [vmem:[#allocation2] sm:$0xff]
      %v76 = vld [vmem:[#allocation3] sm:$0xff]
      %v77 = vsub.f32 %v76, %v75
      %v78 = vld [vmem:[%s2] sm:$0xff]
      %v79 = vsel %vm64, %v78, 0.0
      %v80 = vrot.slane %v79, 4
      %v81 = vadd.f32 %v79, %v80
      %v82 = vrot.slane %v81, 2
      %v83 = vadd.f32 %v81, %v82
      %v84 = vrot.slane %v83, 1
      %v85 = vadd.f32 %v83, %v84
      %v86 = vmul.f32 %v78, %v78
      %v87 = vsel %vm64, %v86, 0.0
      %v88 = vrot.slane %v87, 4
      %v89 = vadd.f32 %v87, %v88
      %v90 = vrot.slane %v89, 2
      %v91 = vadd.f32 %v89, %v90
      %v92 = vrot.slane %v91, 1
      %v93 = vadd.f32 %v91, %v92
      %v94 = vmul.f32 %v85, 0.125
      %v95 = vmul.f32 %v93, 0.125
      %v96 = vmul.f32 %v94, %v94
      %v97 = vsub.f32 %v95, %v96
      %v98 = vmax.f32 %v97, 0.0
      %v99 = vsub.f32 %v78, %v94
      %v100 = vadd.f32 %v98, 1e-05
      %v101 = vrsqrt.pop %v100
      %v102 = vmul.f32 %v99, %v101
      %v103 = vsel %vm64, %v77, 0.0
      %v104 = vrot.slane %v103, 4
      %v105 = vadd.f32 %v103, %v104
      %v106 = vrot.slane %v105, 2
      %v107 = vadd.f32 %v105, %v106
      %v108 = vrot.slane %v107, 1
      %v109 = vadd.f32 %v107, %v108
      %v110 = vmul.f32 %v77, %v77
      %v111 = vsel %vm64, %v110, 0.0
      %v112 = vrot.slane %v111, 4
      %v113 = vadd.f32 %v111, %v112
      %v114 = vrot.slane %v113, 2
      %v115 = vadd.f32 %v113, %v114
      %v116 = vrot.slane %v115, 1
      %v117 = vadd.f32 %v115, %v116
      %v118 = vmul.f32 %v109, 0.125
      %v119 = vmul.f32 %v117, 0.125
      %v120 = vmul.f32 %v118, %v118
      %v121 = vsub.f32 %v119, %v120
      %v122 = vmax.f32 %v121, 0.0
      %v123 = vsub.f32 %v77, %v118
      %v124 = vadd.f32 %v122, 1e-05
      %v125 = vrsqrt.pop %v124
      %v126 = vmul.f32 %v123, %v125
      %v127 = vsel %vm64, %v75, 0.0
      %v128 = vrot.slane %v127, 4
      %v129 = vadd.f32 %v127, %v128
      %v130 = vrot.slane %v129, 2
      %v131 = vadd.f32 %v129, %v130
      %v132 = vrot.slane %v131, 1
      %v133 = vadd.f32 %v131, %v132
      %v134 = vmul.f32 %v75, %v75
      %v135 = vsel %vm64, %v134, 0.0
      %v136 = vrot.slane %v135, 4
      %v137 = vadd.f32 %v135, %v136
      %v138 = vrot.slane %v137, 2
      %v139 = vadd.f32 %v137, %v138
      %v140 = vrot.slane %v139, 1
      %v141 = vadd.f32 %v139, %v140
      %v142 = vmul.f32 %v133, 0.125
      %v143 = vmul.f32 %v141, 0.125
      %v144 = vmul.f32 %v142, %v142
      %v145 = vsub.f32 %v143, %v144
      %v146 = vmax.f32 %v145, 0.0
      %v147 = vsub.f32 %v75, %v142
      %v148 = vadd.f32 %v146, 1e-05
      %v149 = vrsqrt.pop %v148
      %v150 = vmul.f32 %v147, %v149
      %v151 = vld [vmem:[%s3] sm:$0x1]
      %v152 = vld [vmem:[%s3 + $0x1] sm:$0x1]
      %v153 = vld [vmem:[%s3 + $0x2] sm:$0x1]
      %v154 = vld [vmem:[%s3 + $0x3] sm:$0x1]
      %v155 = vld [vmem:[%s3 + $0x4] sm:$0x1]
      %v156 = vld [vmem:[%s3 + $0x5] sm:$0x1]
      %v157 = vld [vmem:[%s3 + $0x6] sm:$0x1]
      %v158 = vld [vmem:[%s3 + $0x7] sm:$0x1]
      %160 = vset.pattern.permute.xlu0 0
      %161 = vperm.xlu0 %160, %v102
      %v162 = vpop.permute.xlu0 %161
      %v164 = vlaneseq
      %v165 = vshrl.u32 %v164, 7
      %v166 = vsub.s32 0, %v165
      %v167 = vrot.slane %v151, %v166
      %v168 = vmul.f32 %v162, %v167
      %170 = vset.pattern.permute.xlu0 0
      %171 = vperm.xlu0 %170, %v126
      %v172 = vpop.permute.xlu0 %171
      %v174 = vlaneseq
      %v175 = vshrl.u32 %v174, 7
      %v176 = vsub.s32 0, %v175
      %v177 = vrot.slane %v152, %v176
      %v178 = vmul.f32 %v172, %v177
      %v179 = vadd.f32 %v168, %v178
      %181 = vset.pattern.permute.xlu0 0
      %182 = vperm.xlu0 %181, %v150
      %v183 = vpop.permute.xlu0 %182
      %v185 = vlaneseq
      %v186 = vshrl.u32 %v185, 7
      %v187 = vsub.s32 0, %v186
      %v188 = vrot.slane %v153, %v187
      %v189 = vmul.f32 %v183, %v188
      %v190 = vadd.f32 %v179, %v189
      %v191 = vlaneseq
      %v192 = vshrl.u32 %v191, 7
      %v193 = vsub.s32 0, %v192
      %v194 = vrot.slane %v154, %v193
      %v195 = vadd.f32 %v190, %v194
      %v196 = vmax.f32 %v195, 0.0
      %v197 = vld [vmem:[#allocation6] sm:$0xff]
      %v198 = vld [vmem:[#allocation6 + $0x8] sm:$0xff]
      %v199 = vld [vmem:[#allocation6 + $0x10] sm:$0xff]
      %v200 = vld [vmem:[#allocation6 + $0x18] sm:$0xff]
      %v201 = vld [vmem:[#allocation6 + $0x20] sm:$0xff]
      %v202 = vld [vmem:[#allocation6 + $0x28] sm:$0xff]
      %v203 = vld [vmem:[#allocation6 + $0x30] sm:$0xff]
      %v204 = vld [vmem:[#allocation6 + $0x38] sm:$0xff]
      %v205 = vld [vmem:[#allocation6 + $0x40] sm:$0xff]
      %v206 = vld [vmem:[#allocation6 + $0x48] sm:$0xff]
      %v207 = vld [vmem:[#allocation6 + $0x50] sm:$0xff]
      %v208 = vld [vmem:[#allocation6 + $0x58] sm:$0xff]
      %v209 = vld [vmem:[#allocation6 + $0x60] sm:$0xff]
      %v210 = vld [vmem:[#allocation6 + $0x68] sm:$0xff]
      %v211 = vld [vmem:[#allocation6 + $0x70] sm:$0xff]
      %v212 = vld [vmem:[#allocation6 + $0x78] sm:$0xff]
      %v213 = vlaneseq
      %v214 = vshrl.u32 %v213, 7
      %v215 = vsub.s32 0, %v214
      %v216 = vrot.slane %v155, %v215
      %217 = vmatprep.subr.mxu0 0.0
      %218 = vmatpush1.msra.mxu0 %v197
      %219 = vmatprep.subr.mxu0 0.0
      %220 = vmatpush1.msra.mxu0 %v198
      %221 = vmatprep.subr.mxu0 0.0
      %222 = vmatpush1.msra.mxu0 %v199
      %223 = vmatprep.subr.mxu0 0.0
      %224 = vmatpush1.msra.mxu0 %v200
      %225 = vmatprep.subr.mxu0 0.0
      %226 = vmatpush1.msra.mxu0 %v201
      %227 = vmatprep.subr.mxu0 0.0
      %228 = vmatpush1.msra.mxu0 %v202
      %229 = vmatprep.subr.mxu0 0.0
      %230 = vmatpush1.msra.mxu0 %v203
      %231 = vmatprep.subr.mxu0 0.0
      %232 = vmatpush1.msra.mxu0 %v204
      %233 = vmatprep.subr.mxu0 0.0
      %234 = vmatpush1.msra.mxu0 %v205
      %235 = vmatprep.subr.mxu0 0.0
      %236 = vmatpush1.msra.mxu0 %v206
      %237 = vmatprep.subr.mxu0 0.0
      %238 = vmatpush1.msra.mxu0 %v207
      %239 = vmatprep.subr.mxu0 0.0
      %240 = vmatpush1.msra.mxu0 %v208
      %241 = vmatprep.subr.mxu0 0.0
      %242 = vmatpush1.msra.mxu0 %v209
      %243 = vmatprep.subr.mxu0 0.0
      %244 = vmatpush1.msra.mxu0 %v210
      %245 = vmatprep.subr.mxu0 0.0
      %246 = vmatpush1.msra.mxu0 %v211
      %247 = vmatprep.subr.mxu0 0.0
      %248 = vmatpush1.msra.mxu0 %v212
      %249 = vmatprep.subr.mxu0 0.0
      %250 = vmatpush1.msra.mxu0 0.0
      %251 = vmatprep.subr.mxu0 0.0
      %252 = vmatpush1.msra.mxu0 0.0
      %253 = vmatprep.subr.mxu0 0.0
      %254 = vmatpush1.msra.mxu0 0.0
      %255 = vmatprep.subr.mxu0 0.0
      %256 = vmatpush1.msra.mxu0 0.0
      %257 = vmatprep.subr.mxu0 0.0
      %258 = vmatpush1.msra.mxu0 0.0
      %259 = vmatprep.subr.mxu0 0.0
      %260 = vmatpush1.msra.mxu0 0.0
      %261 = vmatprep.subr.mxu0 0.0
      %262 = vmatpush1.msra.mxu0 0.0
      %263 = vmatprep.subr.mxu0 0.0
      %264 = vmatpush1.msra.mxu0 0.0
      %265 = vmatprep.subr.mxu0 0.0
      %266 = vmatpush1.msra.mxu0 0.0
      %267 = vmatprep.subr.mxu0 0.0
      %268 = vmatpush1.msra.mxu0 0.0
      %269 = vmatprep.subr.mxu0 0.0
      %270 = vmatpush1.msra.mxu0 0.0
      %271 = vmatprep.subr.mxu0 0.0
      %272 = vmatpush1.msra.mxu0 0.0
      %273 = vmatprep.subr.mxu0 0.0
      %274 = vmatpush1.msra.mxu0 0.0
      %275 = vmatprep.subr.mxu0 0.0
      %276 = vmatpush1.msra.mxu0 0.0
      %277 = vmatprep.subr.mxu0 0.0
      %278 = vmatpush1.msra.mxu0 0.0
      %279 = vmatprep.subr.mxu0 0.0
      %280 = vmatpush1.msra.mxu0 0.0
      %281 = vmatprep.mubr.f32.mxu0 0.0
      %282 = vmatmul.mubr.f32.gmra.mrb[0].mxu0 %v196
      %v283 = vpop.f32.mrb[0].mxu0
      %v284 = vadd.f32 %v216, %v283
      %v285 = vpop.f32.mrb[0].mxu0
      %286 = vdwg.mxu0
      %v287 = vmax.f32 %v284, 0.0
      %s288 = scalar_lea.vmem [#allocation6], 128
      %v289 = vld [vmem:[%s288] sm:$0xff]
      %v290 = vld [vmem:[%s288 + $0x8] sm:$0xff]
      %v291 = vld [vmem:[%s288 + $0x10] sm:$0xff]
      %v292 = vld [vmem:[%s288 + $0x18] sm:$0xff]
      %v293 = vld [vmem:[%s288 + $0x20] sm:$0xff]
      %v294 = vld [vmem:[%s288 + $0x28] sm:$0xff]
      %v295 = vld [vmem:[%s288 + $0x30] sm:$0xff]
      %v296 = vld [vmem:[%s288 + $0x38] sm:$0xff]
      %v297 = vld [vmem:[%s288 + $0x40] sm:$0xff]
      %v298 = vld [vmem:[%s288 + $0x48] sm:$0xff]
      %v299 = vld [vmem:[%s288 + $0x50] sm:$0xff]
      %v300 = vld [vmem:[%s288 + $0x58] sm:$0xff]
      %v301 = vld [vmem:[%s288 + $0x60] sm:$0xff]
      %v302 = vld [vmem:[%s288 + $0x68] sm:$0xff]
      %v303 = vld [vmem:[%s288 + $0x70] sm:$0xff]
      %v304 = vld [vmem:[%s288 + $0x78] sm:$0xff]
      %v305 = vlaneseq
      %v306 = vshrl.u32 %v305, 7
      %v307 = vsub.s32 0, %v306
      %v308 = vrot.slane %v156, %v307
      %309 = vmatprep.subr.mxu0 0.0
      %310 = vmatpush1.msra.mxu0 %v289
      %311 = vmatprep.subr.mxu0 0.0
      %312 = vmatpush1.msra.mxu0 %v290
      %313 = vmatprep.subr.mxu0 0.0
      %314 = vmatpush1.msra.mxu0 %v291
      %315 = vmatprep.subr.mxu0 0.0
      %316 = vmatpush1.msra.mxu0 %v292
      %317 = vmatprep.subr.mxu0 0.0
      %318 = vmatpush1.msra.mxu0 %v293
      %319 = vmatprep.subr.mxu0 0.0
      %320 = vmatpush1.msra.mxu0 %v294
      %321 = vmatprep.subr.mxu0 0.0
      %322 = vmatpush1.msra.mxu0 %v295
      %323 = vmatprep.subr.mxu0 0.0
      %324 = vmatpush1.msra.mxu0 %v296
      %325 = vmatprep.subr.mxu0 0.0
      %326 = vmatpush1.msra.mxu0 %v297
      %327 = vmatprep.subr.mxu0 0.0
      %328 = vmatpush1.msra.mxu0 %v298
      %329 = vmatprep.subr.mxu0 0.0
      %330 = vmatpush1.msra.mxu0 %v299
      %331 = vmatprep.subr.mxu0 0.0
      %332 = vmatpush1.msra.mxu0 %v300
      %333 = vmatprep.subr.mxu0 0.0
      %334 = vmatpush1.msra.mxu0 %v301
      %335 = vmatprep.subr.mxu0 0.0
      %336 = vmatpush1.msra.mxu0 %v302
      %337 = vmatprep.subr.mxu0 0.0
      %338 = vmatpush1.msra.mxu0 %v303
      %339 = vmatprep.subr.mxu0 0.0
      %340 = vmatpush1.msra.mxu0 %v304
      %341 = vmatprep.subr.mxu0 0.0
      %342 = vmatpush1.msra.mxu0 0.0
      %343 = vmatprep.subr.mxu0 0.0
      %344 = vmatpush1.msra.mxu0 0.0
      %345 = vmatprep.subr.mxu0 0.0
      %346 = vmatpush1.msra.mxu0 0.0
      %347 = vmatprep.subr.mxu0 0.0
      %348 = vmatpush1.msra.mxu0 0.0
      %349 = vmatprep.subr.mxu0 0.0
      %350 = vmatpush1.msra.mxu0 0.0
      %351 = vmatprep.subr.mxu0 0.0
      %352 = vmatpush1.msra.mxu0 0.0
      %353 = vmatprep.subr.mxu0 0.0
      %354 = vmatpush1.msra.mxu0 0.0
      %355 = vmatprep.subr.mxu0 0.0
      %356 = vmatpush1.msra.mxu0 0.0
      %357 = vmatprep.subr.mxu0 0.0
      %358 = vmatpush1.msra.mxu0 0.0
      %359 = vmatprep.subr.mxu0 0.0
      %360 = vmatpush1.msra.mxu0 0.0
      %361 = vmatprep.subr.mxu0 0.0
      %362 = vmatpush1.msra.mxu0 0.0
      %363 = vmatprep.subr.mxu0 0.0
      %364 = vmatpush1.msra.mxu0 0.0
      %365 = vmatprep.subr.mxu0 0.0
      %366 = vmatpush1.msra.mxu0 0.0
      %367 = vmatprep.subr.mxu0 0.0
      %368 = vmatpush1.msra.mxu0 0.0
      %369 = vmatprep.subr.mxu0 0.0
      %370 = vmatpush1.msra.mxu0 0.0
      %371 = vmatprep.subr.mxu0 0.0
      %372 = vmatpush1.msra.mxu0 0.0
      %373 = vmatprep.mubr.f32.mxu0 0.0
      %374 = vmatmul.mubr.f32.gmra.mrb[0].mxu0 %v287
      %v375 = vpop.f32.mrb[0].mxu0
      %v376 = vadd.f32 %v308, %v375
      %v377 = vpop.f32.mrb[0].mxu0
      %378 = vdwg.mxu0
      %v379 = vmax.f32 %v376, 0.0
      %v380 = vlaneseq
      %v381 = vshrl.u32 %v380, 7
      %v382 = vsub.s32 0, %v381
      %v383 = vrot.slane %v157, %v382
      %v384 = vmul.f32 %v379, %v383
      %385 = vadd.xlane.f32.xlu0 %v384
      %v386 = vpop.xlane.xlu0 %385
      %v387 = vlaneseq
      %v388 = vshrl.u32 %v387, 7
      %v389 = vsub.s32 0, %v388
      %v390 = vrot.slane %v158, %v389
      %v391 = vadd.f32 %v386, %v390
      %v392 = vxor.u32 %v391, 2147483648
      %v393 = vmul.f32 %v392, 1.442695
      %v394 = vpow.pop %v393
      %v395 = vadd.f32 %v394, 1.0
      %v396 = vrcp.pop %v395
      %v397 = vmul.f32 1.0, %v396
      %398 = vst.msk [vmem:[%s5] sm:$0xff] %vm64, %v397
    $region37: #{tpu_custom_call.1} parent=1 // pred_fallthru
      _
    // Predicated region
    $region38: #{tpu_custom_call.1} parent=1 // pred_check
      _
    $region39: #{tpu_custom_call.1} parent=1 // pred_check_branch
      %400 = sbr.rel (0) target = $region41
    $region40: #{tpu_custom_call.1} parent=1 // pred_region
      _
    $region41: #{tpu_custom_call.1} parent=1 // pred_fallthru
      _
    // Predicated region
    $region42: #{tpu_custom_call.1} parent=1 // pred_check
      _
    $region43: #{tpu_custom_call.1} parent=1 // pred_check_branch
      %402 = sbr.rel (0) target = $region45
    $region44: #{tpu_custom_call.1} parent=1 // pred_region
      _
    $region45: #{tpu_custom_call.1} parent=1 // pred_fallthru
      _
    %403 = vsyncpa [#allocation5], 1
    %404 = vsyncpa [#allocation7], 1

</llo_original>
